<compile_context>
chip_gen: v7x
topology: tpu7x:2x2x1
jax: 0.10.0
libtpu: 0.0.40
codegen_flags: <defaults>
</compile_context>

<pallas_src>
import functools

import jax
import jax.numpy as jnp
from jax.experimental import pallas as pl
from jax.experimental.pallas import tpu as pltpu


def _round_up(v: int, m: int) -> int:
    return (v + m - 1) // m * m


def _fused_mlp_kernel(x_ref, w_ref, g_ref, b_ref, o_ref, act_ref, *,
                      n_real: int, n_layers: int, eps: float):
    """One grid step == one MLP layer (Linear -> train-mode BN -> optional ReLU)."""
    l = pl.program_id(0)

    # Layer 0: load the (padded) input batch into the resident VMEM activation.
    @pl.when(l == 0)
    def _():
        act_ref[...] = x_ref[...].astype(jnp.float32)

    x = act_ref[...]                         # (N_pad, F_pad) f32
    w = w_ref[0]                             # (F_pad, F_pad)
    gamma = g_ref[0]                         # (1, F_pad)
    beta = b_ref[0]                          # (1, F_pad)

    # Linear on the MXU. The bias is intentionally omitted: under training-mode
    # BatchNorm it cancels exactly (it only shifts the batch mean).
    h = jnp.dot(x, w, preferred_element_type=jnp.float32)

    # BatchNorm1d training statistics over the *real* batch rows only.
    # Padded batch rows of x are kept at exactly zero, so the plain column sum
    # equals the sum over real rows.
    inv_n = jnp.float32(1.0 / n_real)
    mean = jnp.sum(h, axis=0, keepdims=True) * inv_n
    centered = h - mean
    row_ids = jax.lax.broadcasted_iota(jnp.int32, h.shape, 0)
    row_mask = row_ids < n_real
    cen = jnp.where(row_mask, centered, 0.0)
    var = jnp.sum(cen * cen, axis=0, keepdims=True) * inv_n   # biased variance

    # Fold BN into one per-feature scale/shift: y = h * scale + shift.
    scale = gamma * jax.lax.rsqrt(var + eps)
    shift = beta - mean * scale
    out = h * scale + shift
    # Keep padded batch rows at exactly zero so the next layer's stats stay valid.
    out = jnp.where(row_mask, out, 0.0)

    @pl.when(l < n_layers - 1)
    def _():
        act_ref[...] = jnp.maximum(out, 0.0)      # hidden layers: ReLU

    @pl.when(l == n_layers - 1)
    def _():
        o_ref[...] = out.astype(o_ref.dtype)      # last layer: no ReLU


def fused_mlp(x_pad, w_stack, g_stack, b_stack, *, n_real, eps=1e-5):
    n_pad, f_pad = x_pad.shape
    n_layers = w_stack.shape[0]
    kernel = functools.partial(_fused_mlp_kernel, n_real=n_real,
                               n_layers=n_layers, eps=eps)
    return pl.pallas_call(
        kernel,
        out_shape=jax.ShapeDtypeStruct((n_pad, f_pad), jnp.float32),
        grid_spec=pltpu.PrefetchScalarGridSpec(
            num_scalar_prefetch=0,
            grid=(n_layers,),
            in_specs=[
                pl.BlockSpec((n_pad, f_pad), lambda l: (0, 0)),        # x: resident
                pl.BlockSpec((1, f_pad, f_pad), lambda l: (l, 0, 0)),  # W_l: pipelined
                pl.BlockSpec((1, 1, f_pad), lambda l: (l, 0, 0)),      # gamma_l
                pl.BlockSpec((1, 1, f_pad), lambda l: (l, 0, 0)),      # beta_l
            ],
            # Resident output block; written only at the last layer.
            out_specs=pl.BlockSpec((n_pad, f_pad), lambda l: (0, 0)),
            scratch_shapes=[pltpu.VMEM((n_pad, f_pad), jnp.float32)],
        ),
        compiler_params=pltpu.CompilerParams(
            # Layers are sequential (activation scratch carries across steps).
            dimension_semantics=("arbitrary",),
            # >= default scoped limit on v5e/v6e/v7x, well under v7x's 64 MiB.
            vmem_limit_bytes=32 * 1024 * 1024,
        ),
    )(x_pad, w_stack, g_stack, b_stack)


class MLPPallas:
    """Mirror of the PyTorch MLP: Linear -> BN(train) -> ReLU per layer, last ReLU dropped."""

    LANES = 128
    SUBLANES = 8

    def __init__(self, sizes, key, batch_norm=True, last_layer_act='linear'):
        assert batch_norm, "This kernel mirrors the default batch_norm=True path."
        self.sizes = list(sizes)
        self.n_layers = len(sizes) - 1
        # One padded width for every layer keeps the fused kernel's weight stack
        # rectangular; fine while max(sizes) is modest. For GEARS-scale widths,
        # tile f_out / K with a real grid instead of a monolithic block.
        self.f_pad = max(_round_up(s, self.LANES) for s in sizes)

        self.params = []           # unpadded (w, b, gamma, beta) for the reference
        w_stack, g_stack, b_stack = [], [], []
        for s in range(self.n_layers):
            key, kw, kb = jax.random.split(key, 3)
            f_in, f_out = sizes[s], sizes[s + 1]
            bound = 1.0 / (f_in ** 0.5)       # PyTorch-style uniform bound
            w = jax.random.uniform(kw, (f_in, f_out), jnp.float32, -bound, bound)
            b = jax.random.uniform(kb, (1, f_out), jnp.float32, -bound, bound)
            gamma = jnp.ones((1, f_out), jnp.float32)   # BatchNorm1d weight init
            beta = jnp.zeros((1, f_out), jnp.float32)   # BatchNorm1d bias init
            self.params.append((w, b, gamma, beta))
            w_stack.append(jnp.zeros((self.f_pad, self.f_pad), jnp.float32)
                           .at[:f_in, :f_out].set(w))
            g_stack.append(jnp.zeros((1, self.f_pad), jnp.float32)
                           .at[:, :f_out].set(gamma))
            b_stack.append(jnp.zeros((1, self.f_pad), jnp.float32)
                           .at[:, :f_out].set(beta))
        self.w_stack = jnp.stack(w_stack)               # (L, F_pad, F_pad)
        self.g_stack = jnp.stack(g_stack)               # (L, 1, F_pad)
        self.b_stack = jnp.stack(b_stack)               # (L, 1, F_pad)

    def __call__(self, x):
        n, f_in = x.shape
        assert f_in == self.sizes[0]
        n_pad = _round_up(max(n, self.SUBLANES), self.SUBLANES)
        x_pad = jnp.zeros((n_pad, self.f_pad), jnp.float32).at[:n, :f_in].set(x)
        out_pad = fused_mlp(x_pad, self.w_stack, self.g_stack, self.b_stack,
                            n_real=n)
        return out_pad[:n, :self.sizes[-1]]


def mlp_reference(x, params):
    """Pure-JAX reference mirroring PyTorch training-mode semantics (with bias)."""
    n_layers = len(params)
    for i, (w, b, gamma, beta) in enumerate(params):
        h = x @ w + b
        mean = jnp.mean(h, axis=0, keepdims=True)
        var = jnp.mean((h - mean) ** 2, axis=0, keepdims=True)
        h = (h - mean) / jnp.sqrt(var + 1e-5)
        h = h * gamma + beta
        if i < n_layers - 1:
            h = jnp.maximum(h, 0.0)
        x = h
    return x


if __name__ == "__main__":
    key = jax.random.PRNGKey(0)
    key, kx, kp = jax.random.split(key, 3)

    sizes = [16, 32, 8]          # small MLP: 16 -> 32 -> 8
    batch = 12                   # deliberately not a multiple of 8: exercises row masking
    x = jax.random.normal(kx, (batch, sizes[0]), jnp.float32)

    model = MLPPallas(sizes, kp)
    out = jax.block_until_ready(model(x))

    ref = mlp_reference(x, model.params)
    assert out.shape == (batch, sizes[-1])
    # The kernel drops the linear bias (exactly cancelled by training-mode BN),
    # so agreement is up to float rounding; 1e-3 gives a comfortable margin.
    assert jnp.allclose(out, ref, atol=1e-3, rtol=1e-3), "Pallas output mismatch vs reference"

    print("KERNEL_OK")
</pallas_src>

<mosaic_0001>
module attributes {stable_mosaic.version = 11 : i64} {
  func.func @_fused_mlp_kernel(%arg0: i32, %arg1: memref<16x128xf32, #tpu.memory_space<vmem>>, %arg2: memref<1x128x128xf32, #tpu.memory_space<vmem>>, %arg3: memref<1x1x128xf32, #tpu.memory_space<vmem>>, %arg4: memref<1x1x128xf32, #tpu.memory_space<vmem>>, %arg5: memref<16x128xf32, #tpu.memory_space<vmem>>, %arg6: memref<16x128xf32, #tpu.memory_space<vmem>>) attributes {dimension_semantics = [#tpu.dimension_semantics<arbitrary>], iteration_bounds = array<i64: 2>, scalar_prefetch = 0 : i64, scratch_operands = 1 : i64, tpu.core_type = #tpu.core_type<tc>, window_params = [{pipeline_mode = #tpu.pipeline_mode<synchronous>, transform_indices = @transform_0, window_bounds = array<i64: 16, 128>}, {transform_indices = @transform_1, window_bounds = array<i64: 1, 128, 128>}, {transform_indices = @transform_2, window_bounds = array<i64: 1, 1, 128>}, {transform_indices = @transform_3, window_bounds = array<i64: 1, 1, 128>}, {pipeline_mode = #tpu.pipeline_mode<synchronous>, transform_indices = @transform_4, window_bounds = array<i64: 16, 128>}]} {
    %c0_i32 = arith.constant 0 : i32
    %0 = arith.cmpi eq, %arg0, %c0_i32 : i32
    %1 = arith.extui %0 : i1 to i32
    %c0_i32_0 = arith.constant 0 : i32
    %2 = arith.cmpi ne, %1, %c0_i32_0 : i32
    scf.if %2 {
      %c0_21 = arith.constant 0 : index
      %c0_22 = arith.constant 0 : index
      %45 = vector.load %arg1[%c0_21, %c0_22] : memref<16x128xf32, #tpu.memory_space<vmem>>, vector<16x128xf32>
      %c0_23 = arith.constant 0 : index
      %c0_24 = arith.constant 0 : index
      %46 = vector.load %arg6[%c0_23, %c0_24] : memref<16x128xf32, #tpu.memory_space<vmem>>, vector<16x128xf32>
      tpu.vector_store %arg6[%c0_23, %c0_24], %45 {strides = array<i32>} : memref<16x128xf32, #tpu.memory_space<vmem>>, vector<16x128xf32>,
    } else {
    }
    %c0 = arith.constant 0 : index
    %c0_1 = arith.constant 0 : index
    %3 = vector.load %arg6[%c0, %c0_1] : memref<16x128xf32, #tpu.memory_space<vmem>>, vector<16x128xf32>
    %c0_2 = arith.constant 0 : index
    %c0_3 = arith.constant 0 : index
    %c0_4 = arith.constant 0 : index
    %4 = vector.load %arg2[%c0_2, %c0_3, %c0_4] : memref<1x128x128xf32, #tpu.memory_space<vmem>>, vector<1x128x128xf32>
    %5 = vector.shape_cast %4 : vector<1x128x128xf32> to vector<128x128xf32>
    %c0_5 = arith.constant 0 : index
    %c0_6 = arith.constant 0 : index
    %c0_7 = arith.constant 0 : index
    %6 = vector.load %arg3[%c0_5, %c0_6, %c0_7] : memref<1x1x128xf32, #tpu.memory_space<vmem>>, vector<1x1x128xf32>
    %7 = vector.shape_cast %6 : vector<1x1x128xf32> to vector<1x128xf32>
    %c0_8 = arith.constant 0 : index
    %c0_9 = arith.constant 0 : index
    %c0_10 = arith.constant 0 : index
    %8 = vector.load %arg4[%c0_8, %c0_9, %c0_10] : memref<1x1x128xf32, #tpu.memory_space<vmem>>, vector<1x1x128xf32>
    %9 = vector.shape_cast %8 : vector<1x1x128xf32> to vector<1x128xf32>
    %cst = arith.constant dense<0.000000e+00> : vector<16x128xf32>
    %10 = tpu.matmul %3, %5, %cst {dimension_numbers = #tpu.dot_dimension_numbers<[1], [0], [0], [1], [0, 0, 1, 1], [], []>} : vector<16x128xf32>, vector<128x128xf32>, vector<16x128xf32> -> vector<16x128xf32>
    %cst_11 = arith.constant dense<0.000000e+00> : vector<128xf32>
    %11 = vector.multi_reduction <add>, %10, %cst_11 [0] : vector<16x128xf32> to vector<128xf32>
    %12 = vector.shape_cast %11 : vector<128xf32> to vector<1x128xf32>
    %cst_12 = arith.constant 0.0833333358 : f32
    %13 = vector.broadcast %cst_12 : f32 to vector<1x128xf32>
    %14 = arith.mulf %12, %13 : vector<1x128xf32>
    %15 = vector.broadcast %14 : vector<1x128xf32> to vector<16x128xf32>
    %16 = arith.subf %10, %15 : vector<16x128xf32>
    %17 = tpu.iota {dimensions = array<i32: 0>} : vector<16x128xi32>
    %c12_i32 = arith.constant 12 : i32
    %18 = vector.broadcast %c12_i32 : i32 to vector<16x128xi32>
    %19 = arith.cmpi slt, %17, %18 : vector<16x128xi32>
    %cst_13 = arith.constant 0.000000e+00 : f32
    %20 = vector.broadcast %cst_13 : f32 to vector<16x128xf32>
    %21 = arith.select %19, %16, %20 : vector<16x128xi1>, vector<16x128xf32>
    %22 = arith.mulf %21, %21 : vector<16x128xf32>
    %cst_14 = arith.constant dense<0.000000e+00> : vector<128xf32>
    %23 = vector.multi_reduction <add>, %22, %cst_14 [0] : vector<16x128xf32> to vector<128xf32>
    %24 = vector.shape_cast %23 : vector<128xf32> to vector<1x128xf32>
    %cst_15 = arith.constant 0.0833333358 : f32
    %25 = vector.broadcast %cst_15 : f32 to vector<1x128xf32>
    %26 = arith.mulf %24, %25 : vector<1x128xf32>
    %cst_16 = arith.constant 9.99999974E-6 : f32
    %27 = vector.broadcast %cst_16 : f32 to vector<1x128xf32>
    %28 = arith.addf %26, %27 : vector<1x128xf32>
    %29 = math.rsqrt %28 : vector<1x128xf32>
    %30 = arith.mulf %7, %29 : vector<1x128xf32>
    %31 = arith.mulf %14, %30 : vector<1x128xf32>
    %32 = arith.subf %9, %31 : vector<1x128xf32>
    %33 = vector.broadcast %30 : vector<1x128xf32> to vector<16x128xf32>
    %34 = arith.mulf %10, %33 : vector<16x128xf32>
    %35 = vector.broadcast %32 : vector<1x128xf32> to vector<16x128xf32>
    %36 = arith.addf %34, %35 : vector<16x128xf32>
    %cst_17 = arith.constant 0.000000e+00 : f32
    %37 = vector.broadcast %cst_17 : f32 to vector<16x128xf32>
    %38 = arith.select %19, %36, %37 : vector<16x128xi1>, vector<16x128xf32>
    %c1_i32 = arith.constant 1 : i32
    %39 = arith.cmpi slt, %arg0, %c1_i32 : i32
    %40 = arith.extui %39 : i1 to i32
    %c0_i32_18 = arith.constant 0 : i32
    %41 = arith.cmpi ne, %40, %c0_i32_18 : i32
    scf.if %41 {
      %cst_21 = arith.constant 0.000000e+00 : f32
      %45 = vector.broadcast %cst_21 : f32 to vector<16x128xf32>
      %46 = arith.maximumf %38, %45 : vector<16x128xf32>
      %c0_22 = arith.constant 0 : index
      %c0_23 = arith.constant 0 : index
      %47 = vector.load %arg6[%c0_22, %c0_23] : memref<16x128xf32, #tpu.memory_space<vmem>>, vector<16x128xf32>
      tpu.vector_store %arg6[%c0_22, %c0_23], %46 {strides = array<i32>} : memref<16x128xf32, #tpu.memory_space<vmem>>, vector<16x128xf32>,
    } else {
    }
    %c1_i32_19 = arith.constant 1 : i32
    %42 = arith.cmpi eq, %arg0, %c1_i32_19 : i32
    %43 = arith.extui %42 : i1 to i32
    %c0_i32_20 = arith.constant 0 : i32
    %44 = arith.cmpi ne, %43, %c0_i32_20 : i32
    scf.if %44 {
      %c0_21 = arith.constant 0 : index
      %c0_22 = arith.constant 0 : index
      %45 = vector.load %arg5[%c0_21, %c0_22] : memref<16x128xf32, #tpu.memory_space<vmem>>, vector<16x128xf32>
      tpu.vector_store %arg5[%c0_21, %c0_22], %38 {strides = array<i32>} : memref<16x128xf32, #tpu.memory_space<vmem>>, vector<16x128xf32>,
    } else {
    }
    return
  }
  func.func @transform_0(%arg0: i32) -> (i32, i32) {
    %c0_i32 = arith.constant 0 : i32
    %c0_i32_0 = arith.constant 0 : i32
    %c0_i32_1 = arith.constant 0 : i32
    return %c0_i32, %c0_i32_0 : i32, i32
  }
  func.func @transform_1(%arg0: i32) -> (i32, i32, i32) {
    %c0_i32 = arith.constant 0 : i32
    %c0_i32_0 = arith.constant 0 : i32
    %c0_i32_1 = arith.constant 0 : i32
    return %arg0, %c0_i32, %c0_i32_0 : i32, i32, i32
  }
  func.func @transform_2(%arg0: i32) -> (i32, i32, i32) {
    %c0_i32 = arith.constant 0 : i32
    %c0_i32_0 = arith.constant 0 : i32
    %c0_i32_1 = arith.constant 0 : i32
    return %arg0, %c0_i32, %c0_i32_0 : i32, i32, i32
  }
  func.func @transform_3(%arg0: i32) -> (i32, i32, i32) {
    %c0_i32 = arith.constant 0 : i32
    %c0_i32_0 = arith.constant 0 : i32
    %c0_i32_1 = arith.constant 0 : i32
    return %arg0, %c0_i32, %c0_i32_0 : i32, i32, i32
  }
  func.func @transform_4(%arg0: i32) -> (i32, i32) {
    %c0_i32 = arith.constant 0 : i32
    %c0_i32_0 = arith.constant 0 : i32
    %c0_i32_1 = arith.constant 0 : i32
    return %c0_i32, %c0_i32_0 : i32, i32
  }
}

</mosaic_0001>

<llo_original>
// kernel: tpu_custom_call.1
$region0: #{tpu_custom_call.1}
  #allocation0 [shape = 'u32[]', space=smem, size = 0x4, offset = 0x4, fixed_abs, tag = 'smem constant byte address 0x4 - core index']
  #allocation1 [shape = 'u32[144,128]{1,0:T(1,128)}', space=vmem, size = 0x12000, scoped, tag = 'internal scratch']
  #allocation2 [shape = 'f32[16,128]{1,0:T(8,128)}', space=vmem, size = 0x2000, scoped, tag = 'scratch operand']
  %s0 = inlined_call_operand.hbm [shape: f32[16,128], index: 0, kind: input, shape index: {}]
  %s1 = inlined_call_operand.hbm [shape: f32[2,128,128], index: 1, kind: input, shape index: {}]
  %s2 = inlined_call_operand.vmem [shape: f32[2,1,128], index: 2, kind: input, shape index: {}]
  %s3 = inlined_call_operand.vmem [shape: f32[2,1,128], index: 3, kind: input, shape index: {}]
  %s4 = inlined_call_operand.hbm [shape: f32[16,128], index: 4, kind: output, shape index: {}]
  %s5 = sld [smem:[#allocation0]]
  $region69: #{tpu_custom_call.1} parent=0
    _
  %s7 = ssub.s32 1, %s5
  %s8 = scalar_select 0, %s7, %s5
  $region1: #{tpu_custom_call.1} parent=0
    #allocation3 [shape = 'u8[8192]{0}', space=vmem, size = 0x2000, scoped, tag = 'input window, operand 0, single buffered']
    #allocation4 [shape = 's32[2]{0}', space=sflag, size = 0x8, scoped, tag = 'scoped memory for tpu_custom_call.1']
    #allocation5 [shape = 's32[2]{0}', space=sflag, size = 0x8, scoped, tag = 'scoped memory for tpu_custom_call.1']
    #allocation6 [shape = 'u8[131072]{0}', space=vmem, size = 0x20000, scoped, tag = 'input window, operand 1']
    #allocation7 [shape = 's32[2]{0}', space=sflag, size = 0x8, scoped, tag = 'scoped memory for tpu_custom_call.1']
    #allocation8 [shape = 'u8[8192]{0}', space=vmem, size = 0x2000, scoped, tag = 'output window, operand 0, single buffered']
    %9 = vsyncpa [#allocation4], 0
    %10 = vsyncpa [#allocation7], 0
    %s11 = scalar_lea.sflag [#allocation7], 1
    %12 = vsyncpa %s11, 0
    %13 = vsyncpa [#allocation5], 0
    loop: start=0, step=1, limit=4
    $region2: #{tpu_custom_call.1} parent=1 // loop_pre_header
      _
    $region3: #{tpu_custom_call.1} parent=1 // loop_header
      %s15 = sphi 0, %s19
      %p16 = scmp.ge.s32.totalorder %s15, 4
      %s23 = sphi 0, %s23
      %s25 = sphi 0, %s23
      %s26 = sphi 0, %s25
      %s40 = sphi 0, %s26
      %s46 = sphi 0, %s48
      %s49 = sphi 0, %s46
      %s50 = sphi 0, %s49
      %s66 = sphi 0, %s50
      %s72 = sphi 0, %s74
      %s75 = sphi 0, %s72
      %s76 = sphi 0, %s75
      %s92 = sphi 0, %s76
      %s98 = sphi 0, %s100
      %s101 = sphi 0, %s98
      %s102 = sphi 0, %s101
      %s118 = sphi 0, %s102
      %s122 = sphi 0, %s122
      %s124 = sphi 0, %s122
      %s125 = sphi 0, %s124
      %s139 = sphi 0, %s125
    $region4: #{tpu_custom_call.1} parent=1 // loop_header_branch
      %18 = sbr.rel (%p16) target = $region8
    $region5: #{tpu_custom_call.1} parent=1 // loop_body
      %s20 = ssub.s32 %s15, 1
      %s21 = ssub.s32 %s15, 2
      %s22 = sadd.s32 %s15, 1
      %s24 = sadd.s32 %s23, 1
      %p27 = scmp.eq.s32.totalorder %s15, 1
      %p28 = scmp.ne.s32.totalorder %s23, %s25
      %p29 = scmp.eq.s32.totalorder %s15, 0
      %p30 = por %p28, %p29
      %p31 = scmp.ne.s32.totalorder %s23, %s25
      %p32 = scmp.eq.s32.totalorder %s20, 1
      %p33 = por %p31, %p32
      %p34 = scmp.ne.s32.totalorder %s25, %s26
      %p35 = scmp.eq.s32.totalorder %s20, 0
      %p36 = por %p34, %p35
      %p37 = scmp.ne.s32.totalorder %s25, %s26
      %p38 = scmp.eq.s32.totalorder %s21, 1
      %p39 = por %p37, %p38
      %p41 = scmp.ne.s32.totalorder %s26, %s40
      %p42 = scmp.eq.s32.totalorder %s21, 0
      %p43 = por %p41, %p42
      %s44 = ssub.s32 %s15, %s22
      %p45 = scmp.eq.s32.totalorder %s44, 0
      %s47 = sadd.s32 %s46, 1
      %s48 = scalar_select %p45, %s46, %s47
      %p51 = pneg %p45
      %p52 = scmp.eq.s32.totalorder %s15, 1
      %p53 = por %p51, %p52
      %p54 = scmp.ne.s32.totalorder %s46, %s49
      %p55 = scmp.eq.s32.totalorder %s15, 0
      %p56 = por %p54, %p55
      %p57 = scmp.ne.s32.totalorder %s46, %s49
      %p58 = scmp.eq.s32.totalorder %s20, 1
      %p59 = por %p57, %p58
      %p60 = scmp.ne.s32.totalorder %s49, %s50
      %p61 = scmp.eq.s32.totalorder %s20, 0
      %p62 = por %p60, %p61
      %p63 = scmp.ne.s32.totalorder %s49, %s50
      %p64 = scmp.eq.s32.totalorder %s21, 1
      %p65 = por %p63, %p64
      %p67 = scmp.ne.s32.totalorder %s50, %s66
      %p68 = scmp.eq.s32.totalorder %s21, 0
      %p69 = por %p67, %p68
      %s70 = ssub.s32 %s15, %s22
      %p71 = scmp.eq.s32.totalorder %s70, 0
      %s73 = sadd.s32 %s72, 1
      %s74 = scalar_select %p71, %s72, %s73
      %p77 = pneg %p71
      %p78 = scmp.eq.s32.totalorder %s15, 1
      %p79 = por %p77, %p78
      %p80 = scmp.ne.s32.totalorder %s72, %s75
      %p81 = scmp.eq.s32.totalorder %s15, 0
      %p82 = por %p80, %p81
      %p83 = scmp.ne.s32.totalorder %s72, %s75
      %p84 = scmp.eq.s32.totalorder %s20, 1
      %p85 = por %p83, %p84
      %p86 = scmp.ne.s32.totalorder %s75, %s76
      %p87 = scmp.eq.s32.totalorder %s20, 0
      %p88 = por %p86, %p87
      %p89 = scmp.ne.s32.totalorder %s75, %s76
      %p90 = scmp.eq.s32.totalorder %s21, 1
      %p91 = por %p89, %p90
      %p93 = scmp.ne.s32.totalorder %s76, %s92
      %p94 = scmp.eq.s32.totalorder %s21, 0
      %p95 = por %p93, %p94
      %s96 = ssub.s32 %s15, %s22
      %p97 = scmp.eq.s32.totalorder %s96, 0
      %s99 = sadd.s32 %s98, 1
      %s100 = scalar_select %p97, %s98, %s99
      %p103 = pneg %p97
      %p104 = scmp.eq.s32.totalorder %s15, 1
      %p105 = por %p103, %p104
      %p106 = scmp.ne.s32.totalorder %s98, %s101
      %p107 = scmp.eq.s32.totalorder %s15, 0
      %p108 = por %p106, %p107
      %p109 = scmp.ne.s32.totalorder %s98, %s101
      %p110 = scmp.eq.s32.totalorder %s20, 1
      %p111 = por %p109, %p110
      %p112 = scmp.ne.s32.totalorder %s101, %s102
      %p113 = scmp.eq.s32.totalorder %s20, 0
      %p114 = por %p112, %p113
      %p115 = scmp.ne.s32.totalorder %s101, %s102
      %p116 = scmp.eq.s32.totalorder %s21, 1
      %p117 = por %p115, %p116
      %p119 = scmp.ne.s32.totalorder %s102, %s118
      %p120 = scmp.eq.s32.totalorder %s21, 0
      %p121 = por %p119, %p120
      %s123 = sadd.s32 %s122, 1
      %p126 = scmp.eq.s32.totalorder %s15, 1
      %p127 = scmp.ne.s32.totalorder %s122, %s124
      %p128 = scmp.eq.s32.totalorder %s15, 0
      %p129 = por %p127, %p128
      %p130 = scmp.ne.s32.totalorder %s122, %s124
      %p131 = scmp.eq.s32.totalorder %s20, 1
      %p132 = por %p130, %p131
      %p133 = scmp.ne.s32.totalorder %s124, %s125
      %p134 = scmp.eq.s32.totalorder %s20, 0
      %p135 = por %p133, %p134
      %p136 = scmp.ne.s32.totalorder %s124, %s125
      %p137 = scmp.eq.s32.totalorder %s21, 1
      %p138 = por %p136, %p137
      %p140 = scmp.ne.s32.totalorder %s125, %s139
      %p141 = scmp.eq.s32.totalorder %s21, 0
      %p142 = por %p140, %p141
      %p143 = scmp.le.s32.totalorder 1, %s15
      %p144 = scmp.lt.s32.totalorder %s15, 3
      %p145 = pnand %p143, %p144
      %p146 = pneg %p145
      // Predicated region
      $region9: #{tpu_custom_call.1} parent=5 // pred_check
        _
      $region10: #{tpu_custom_call.1} parent=5 // pred_check_branch
        %148 = sbr.rel (%p145) target = $region12
      $region11: #{tpu_custom_call.1} parent=5 // pred_region
        %s149 = ssub.s32 %s15, 1
        // Predicated region
        $region13: #{tpu_custom_call.1} parent=11 // pred_check
          %p150 = pneg %p36
        $region14: #{tpu_custom_call.1} parent=11 // pred_check_branch
          %152 = sbr.rel (%p150) target = $region16
        $region15: #{tpu_custom_call.1} parent=11 // pred_region
          %s154 = ssub.s32 256, 256
          %155 = vsyncadd [#allocation4], %s154
          %s156 = sshll.u32 [#allocation3], 4
          %s157 = int_to_ptr.vmem [resolvable:$true] %s156
          %162 = dma.hbm_to_vmem [thread:$0]  %s0, 256, %s157, [#allocation4], 128, 128, 8
        $region16: #{tpu_custom_call.1} parent=11 // pred_fallthru
          _
      $region12: #{tpu_custom_call.1} parent=5 // pred_fallthru
        _
      %p163 = scmp.lt.s32.totalorder %s15, 2
      // Predicated region
      $region17: #{tpu_custom_call.1} parent=5 // pred_check
        %p164 = pneg %p163
      $region18: #{tpu_custom_call.1} parent=5 // pred_check_branch
        %166 = sbr.rel (%p164) target = $region20
      $region19: #{tpu_custom_call.1} parent=5 // pred_region
        // Predicated region
        $region21: #{tpu_custom_call.1} parent=19 // pred_check
          %p167 = pneg %p56
        $region22: #{tpu_custom_call.1} parent=19 // pred_check_branch
          %169 = sbr.rel (%p167) target = $region24
        $region23: #{tpu_custom_call.1} parent=19 // pred_region
          %s170 = sand.u32 %s46, 1
          %s171 = scalar_lea.sflag [#allocation7], %s170
          %s172 = sand.u32 %s46, 1
          %s173 = smul.addr %s172, 128
          %s174 = scalar_lea.vmem [#allocation6], %s173
          %s176 = ssub.s32 2048, 2048
          %177 = vsyncadd %s171, %s176
          %s178 = smul.addr %s15, 16
          %s179 = smul.addr %s178, 128
          %s180 = scalar_lea.hbm %s1, %s179
          %s181 = sshll.u32 %s174, 4
          %s182 = int_to_ptr.vmem [resolvable:$true] %s181
          %187 = dma.hbm_to_vmem [thread:$0]  %s180, 2048, %s182, %s171, 128, 128, 8
        $region24: #{tpu_custom_call.1} parent=19 // pred_fallthru
          _
        // Predicated region
        $region25: #{tpu_custom_call.1} parent=19 // pred_check
          %p188 = pneg %p82
        $region26: #{tpu_custom_call.1} parent=19 // pred_check_branch
          %190 = sbr.rel (%p188) target = $region28
        $region27: #{tpu_custom_call.1} parent=19 // pred_region
          %p191 = scmp.lt.s32.totalorder %s15, 1
          %s192 = scalar_select %p191, %s15, 1
          %s193 = scalar_lea.vmem %s2, %s192
        $region28: #{tpu_custom_call.1} parent=19 // pred_fallthru
          _
        // Predicated region
        $region29: #{tpu_custom_call.1} parent=19 // pred_check
          %p194 = pneg %p108
        $region30: #{tpu_custom_call.1} parent=19 // pred_check_branch
          %196 = sbr.rel (%p194) target = $region32
        $region31: #{tpu_custom_call.1} parent=19 // pred_region
          %p197 = scmp.lt.s32.totalorder %s15, 1
          %s198 = scalar_select %p197, %s15, 1
          %s199 = scalar_lea.vmem %s3, %s198
        $region32: #{tpu_custom_call.1} parent=19 // pred_fallthru
          _
      $region20: #{tpu_custom_call.1} parent=5 // pred_fallthru
        _
      %p200 = scmp.le.s32.totalorder 1, %s15
      %p201 = scmp.lt.s32.totalorder %s15, 3
      %p202 = pnand %p200, %p201
      %p203 = pneg %p202
      // Predicated region
      $region33: #{tpu_custom_call.1} parent=5 // pred_check
        _
      $region34: #{tpu_custom_call.1} parent=5 // pred_check_branch
        %205 = sbr.rel (%p202) target = $region36
      $region35: #{tpu_custom_call.1} parent=5 // pred_region
        %s206 = ssub.s32 %s15, 1
        // Predicated region
        $region37: #{tpu_custom_call.1} parent=35 // pred_check
          %p207 = pneg %p36
        $region38: #{tpu_custom_call.1} parent=35 // pred_check_branch
          %209 = sbr.rel (%p207) target = $region40
        $region39: #{tpu_custom_call.1} parent=35 // pred_region
          %210 = dma.done [#allocation4], 256
        $region40: #{tpu_custom_call.1} parent=35 // pred_fallthru
          _
        %s211 = sand.u32 %s49, 1
        %s212 = scalar_lea.sflag [#allocation7], %s211
        %s213 = sand.u32 %s49, 1
        %s214 = smul.addr %s213, 128
        %s215 = scalar_lea.vmem [#allocation6], %s214
        // Predicated region
        $region41: #{tpu_custom_call.1} parent=35 // pred_check
          %p216 = pneg %p62
        $region42: #{tpu_custom_call.1} parent=35 // pred_check_branch
          %218 = sbr.rel (%p216) target = $region44
        $region43: #{tpu_custom_call.1} parent=35 // pred_region
          %219 = dma.done %s212, 2048
        $region44: #{tpu_custom_call.1} parent=35 // pred_fallthru
          _
        %p220 = pneg %p36
        %p221 = pneg %p33
        %s222 = sand.u32 %s49, 1
        %s223 = scalar_lea.sflag [#allocation7], %s222
        %s224 = sand.u32 %s49, 1
        %s225 = smul.addr %s224, 128
        %s226 = scalar_lea.vmem [#allocation6], %s225
        %p227 = pneg %p62
        %p228 = pneg %p59
        %p229 = scmp.lt.s32.totalorder %s20, 1
        %s230 = scalar_select %p229, %s20, 1
        %s231 = scalar_lea.vmem %s2, %s230
        %p232 = pneg %p88
        %p233 = pneg %p85
        %p234 = scmp.lt.s32.totalorder %s20, 1
        %s235 = scalar_select %p234, %s20, 1
        %s236 = scalar_lea.vmem %s3, %s235
        %p237 = pneg %p114
        %p238 = pneg %p111
        %p239 = pneg %p135
        %p240 = pneg %p132
        %p241 = scmp.lt.s32.totalorder %s20, 1
        %s242 = scalar_select %p241, %s20, 1
        %s243 = scalar_lea.vmem %s2, %s242
        %p244 = scmp.lt.s32.totalorder %s20, 1
        %s245 = scalar_select %p244, %s20, 1
        %s246 = scalar_lea.vmem %s3, %s245
        %p247 = scmp.eq.s32.totalorder %s20, 0
        // Predicated region
        $region45: #{tpu_custom_call.1} parent=35 // pred_check
          %p248 = pneg %p247
        $region46: #{tpu_custom_call.1} parent=35 // pred_check_branch
          %250 = sbr.rel (%p248) target = $region48
        $region47: #{tpu_custom_call.1} parent=35 // pred_region
          %v251 = vld [vmem:[#allocation3] sm:$0xff]
          %v252 = vld [vmem:[#allocation3 + $0x8] sm:$0xff]
          %253 = vst [vmem:[#allocation2] sm:$0xff] %v251
          %254 = vst [vmem:[#allocation2 + $0x8] sm:$0xff] %v252
        $region48: #{tpu_custom_call.1} parent=35 // pred_fallthru
          _
        %v255 = vld [vmem:[#allocation2] sm:$0xff]
        %v256 = vld [vmem:[#allocation2 + $0x8] sm:$0xff]
        %v257 = vld [vmem:[%s215] sm:$0xff]
        %v258 = vld [vmem:[%s215 + $0x8] sm:$0xff]
        %v259 = vld [vmem:[%s215 + $0x10] sm:$0xff]
        %v260 = vld [vmem:[%s215 + $0x18] sm:$0xff]
        %v261 = vld [vmem:[%s215 + $0x20] sm:$0xff]
        %v262 = vld [vmem:[%s215 + $0x28] sm:$0xff]
        %v263 = vld [vmem:[%s215 + $0x30] sm:$0xff]
        %v264 = vld [vmem:[%s215 + $0x38] sm:$0xff]
        %v265 = vld [vmem:[%s215 + $0x40] sm:$0xff]
        %v266 = vld [vmem:[%s215 + $0x48] sm:$0xff]
        %v267 = vld [vmem:[%s215 + $0x50] sm:$0xff]
        %v268 = vld [vmem:[%s215 + $0x58] sm:$0xff]
        %v269 = vld [vmem:[%s215 + $0x60] sm:$0xff]
        %v270 = vld [vmem:[%s215 + $0x68] sm:$0xff]
        %v271 = vld [vmem:[%s215 + $0x70] sm:$0xff]
        %v272 = vld [vmem:[%s215 + $0x78] sm:$0xff]
        %v273 = vld [vmem:[%s243] sm:$0x1]
        %v274 = vld [vmem:[%s246] sm:$0x1]
        %275 = vmatprep.subr.mxu0 0.0
        %276 = vmatpush1.msra.mxu0 %v257
        %277 = vmatprep.subr.mxu0 0.0
        %278 = vmatpush1.msra.mxu0 %v258
        %279 = vmatprep.subr.mxu0 0.0
        %280 = vmatpush1.msra.mxu0 %v259
        %281 = vmatprep.subr.mxu0 0.0
        %282 = vmatpush1.msra.mxu0 %v260
        %283 = vmatprep.subr.mxu0 0.0
        %284 = vmatpush1.msra.mxu0 %v261
        %285 = vmatprep.subr.mxu0 0.0
        %286 = vmatpush1.msra.mxu0 %v262
        %287 = vmatprep.subr.mxu0 0.0
        %288 = vmatpush1.msra.mxu0 %v263
        %289 = vmatprep.subr.mxu0 0.0
        %290 = vmatpush1.msra.mxu0 %v264
        %291 = vmatprep.subr.mxu0 0.0
        %292 = vmatpush1.msra.mxu0 %v265
        %293 = vmatprep.subr.mxu0 0.0
        %294 = vmatpush1.msra.mxu0 %v266
        %295 = vmatprep.subr.mxu0 0.0
        %296 = vmatpush1.msra.mxu0 %v267
        %297 = vmatprep.subr.mxu0 0.0
        %298 = vmatpush1.msra.mxu0 %v268
        %299 = vmatprep.subr.mxu0 0.0
        %300 = vmatpush1.msra.mxu0 %v269
        %301 = vmatprep.subr.mxu0 0.0
        %302 = vmatpush1.msra.mxu0 %v270
        %303 = vmatprep.subr.mxu0 0.0
        %304 = vmatpush1.msra.mxu0 %v271
        %305 = vmatprep.subr.mxu0 0.0
        %306 = vmatpush1.msra.mxu0 %v272
        %307 = vmatprep.subr.mxu0 0.0
        %308 = vmatpush1.msra.mxu0 0.0
        %309 = vmatprep.subr.mxu0 0.0
        %310 = vmatpush1.msra.mxu0 0.0
        %311 = vmatprep.subr.mxu0 0.0
        %312 = vmatpush1.msra.mxu0 0.0
        %313 = vmatprep.subr.mxu0 0.0
        %314 = vmatpush1.msra.mxu0 0.0
        %315 = vmatprep.subr.mxu0 0.0
        %316 = vmatpush1.msra.mxu0 0.0
        %317 = vmatprep.subr.mxu0 0.0
        %318 = vmatpush1.msra.mxu0 0.0
        %319 = vmatprep.subr.mxu0 0.0
        %320 = vmatpush1.msra.mxu0 0.0
        %321 = vmatprep.subr.mxu0 0.0
        %322 = vmatpush1.msra.mxu0 0.0
        %323 = vmatprep.subr.mxu0 0.0
        %324 = vmatpush1.msra.mxu0 0.0
        %325 = vmatprep.subr.mxu0 0.0
        %326 = vmatpush1.msra.mxu0 0.0
        %327 = vmatprep.subr.mxu0 0.0
        %328 = vmatpush1.msra.mxu0 0.0
        %329 = vmatprep.subr.mxu0 0.0
        %330 = vmatpush1.msra.mxu0 0.0
        %331 = vmatprep.subr.mxu0 0.0
        %332 = vmatpush1.msra.mxu0 0.0
        %333 = vmatprep.subr.mxu0 0.0
        %334 = vmatpush1.msra.mxu0 0.0
        %335 = vmatprep.subr.mxu0 0.0
        %336 = vmatpush1.msra.mxu0 0.0
        %337 = vmatprep.subr.mxu0 0.0
        %338 = vmatpush1.msra.mxu0 0.0
        %339 = vmatprep.mubr.f32.mxu0 0.0
        %340 = vmatmul.mubr.f32.gmra.mrb[0].mxu0 %v255
        %v341 = vpop.f32.mrb[0].mxu0
        %v342 = vadd.f32 0.0, %v341
        %v343 = vpop.f32.mrb[0].mxu0
        %344 = vmatprep.mubr.f32.mxu0 0.0
        %345 = vmatmul.mubr.f32.gmra.mrb[0].mxu0 %v256
        %v346 = vpop.f32.mrb[0].mxu0
        %v347 = vadd.f32 0.0, %v346
        %v348 = vpop.f32.mrb[0].mxu0
        %349 = vdwg.mxu0
        %v350 = vadd.f32 %v342, %v347
        %v351 = vrot.slane %v350, 4
        %v352 = vadd.f32 %v350, %v351
        %v353 = vrot.slane %v352, 2
        %v354 = vadd.f32 %v352, %v353
        %v355 = vrot.slane %v354, 1
        %v356 = vadd.f32 %v354, %v355
        %v357 = vmul.f32 %v356, 0.083333336
        %v358 = vsub.f32 %v342, %v357
        %v359 = vsub.f32 %v347, %v357
        %v360 = vlaneseq
        %v361 = vshrl.u32 %v360, 7
        %v362 = vadd.s32 %v361, 8
        %vm363 = vcmp.lt.s32.totalorder %v361, 12
        %vm364 = vcmp.lt.s32.totalorder %v362, 12
        %v365 = vsel %vm363, %v358, 0.0
        %v366 = vsel %vm364, %v359, 0.0
        %v367 = vmul.f32 %v365, %v365
        %v368 = vmul.f32 %v366, %v366
        %v369 = vadd.f32 %v367, %v368
        %v370 = vrot.slane %v369, 4
        %v371 = vadd.f32 %v369, %v370
        %v372 = vrot.slane %v371, 2
        %v373 = vadd.f32 %v371, %v372
        %v374 = vrot.slane %v373, 1
        %v375 = vadd.f32 %v373, %v374
        %v376 = vmul.f32 %v375, 0.083333336
        %v377 = vadd.f32 %v376, 1e-05
        %v378 = vrsqrt.pop %v377
        %v379 = vmul.f32 %v273, %v378
        %v380 = vmul.f32 %v357, %v379
        %v381 = vsub.f32 %v274, %v380
        %v383 = vlaneseq
        %v384 = vshrl.u32 %v383, 7
        %v385 = vsub.s32 0, %v384
        %v386 = vrot.slane %v379, %v385
        %v388 = vmul.f32 %v342, %v386
        %v389 = vmul.f32 %v347, %v386
        %v391 = vlaneseq
        %v392 = vshrl.u32 %v391, 7
        %v393 = vsub.s32 0, %v392
        %v394 = vrot.slane %v381, %v393
        %v396 = vadd.f32 %v388, %v394
        %v397 = vadd.f32 %v389, %v394
        %v398 = vsel %vm363, %v396, 0.0
        %v399 = vsel %vm364, %v397, 0.0
        %p400 = scmp.lt.s32.totalorder %s20, 1
        // Predicated region
        $region49: #{tpu_custom_call.1} parent=35 // pred_check
          %p401 = pneg %p400
        $region50: #{tpu_custom_call.1} parent=35 // pred_check_branch
          %403 = sbr.rel (%p401) target = $region52
        $region51: #{tpu_custom_call.1} parent=35 // pred_region
          %v404 = vmax.f32 %v398, 0.0
          %v405 = vmax.f32 %v399, 0.0
          %406 = vst [vmem:[#allocation2] sm:$0xff] %v404
          %407 = vst [vmem:[#allocation2 + $0x8] sm:$0xff] %v405
        $region52: #{tpu_custom_call.1} parent=35 // pred_fallthru
          _
        %p408 = scmp.eq.s32.totalorder %s20, 1
        // Predicated region
        $region53: #{tpu_custom_call.1} parent=35 // pred_check
          %p409 = pneg %p408
        $region54: #{tpu_custom_call.1} parent=35 // pred_check_branch
          %411 = sbr.rel (%p409) target = $region56
        $region55: #{tpu_custom_call.1} parent=35 // pred_region
          %412 = vst [vmem:[#allocation8] sm:$0xff] %v398
          %413 = vst [vmem:[#allocation8 + $0x8] sm:$0xff] %v399
        $region56: #{tpu_custom_call.1} parent=35 // pred_fallthru
          _
        // Predicated region
        $region57: #{tpu_custom_call.1} parent=35 // pred_check
          %p414 = pneg %p132
        $region58: #{tpu_custom_call.1} parent=35 // pred_check_branch
          %416 = sbr.rel (%p414) target = $region60
        $region59: #{tpu_custom_call.1} parent=35 // pred_region
          %s418 = ssub.s32 256, 256
          %419 = vsyncadd [#allocation5], %s418
          %s420 = sshll.u32 [#allocation8], 4
          %s421 = int_to_ptr.vmem [resolvable:$true] %s420
          %426 = dma.vmem_to_hbm [thread:$0]  %s421, 256, %s4, [#allocation5], 128, 128, 8
        $region60: #{tpu_custom_call.1} parent=35 // pred_fallthru
          _
        // Predicated region
        $region61: #{tpu_custom_call.1} parent=35 // pred_check
          %p427 = pneg %p132
        $region62: #{tpu_custom_call.1} parent=35 // pred_check_branch
          %429 = sbr.rel (%p427) target = $region64
        $region63: #{tpu_custom_call.1} parent=35 // pred_region
          %430 = dma.done [#allocation5], 256
        $region64: #{tpu_custom_call.1} parent=35 // pred_fallthru
          _
      $region36: #{tpu_custom_call.1} parent=5 // pred_fallthru
        _
      %p431 = scmp.le.s32.totalorder 2, %s15
      // Predicated region
      $region65: #{tpu_custom_call.1} parent=5 // pred_check
        %p432 = pneg %p431
      $region66: #{tpu_custom_call.1} parent=5 // pred_check_branch
        %434 = sbr.rel (%p432) target = $region68
      $region67: #{tpu_custom_call.1} parent=5 // pred_region
        %s435 = ssub.s32 %s15, 2
      $region68: #{tpu_custom_call.1} parent=5 // pred_fallthru
        _
    $region6: #{tpu_custom_call.1} parent=1 // loop_footer
      %s19 = sadd.s32 1, %s15
    $region7: #{tpu_custom_call.1} parent=1 // loop_footer_branch
      %14 = sbr.rel target = $region3
    $region8: #{tpu_custom_call.1} parent=1 // loop_exit
      _
    %436 = vsyncpa [#allocation4], 1
    %s437 = scalar_lea.sflag [#allocation4], 1
    %438 = vsyncpa %s437, 1
    %439 = vsyncpa [#allocation7], 1
    %s440 = scalar_lea.sflag [#allocation7], 1
    %441 = vsyncpa %s440, 1
    %442 = vsyncpa [#allocation5], 1
    %s443 = scalar_lea.sflag [#allocation5], 1
    %444 = vsyncpa %s443, 1

</llo_original>
